<compile_context>
chip_gen: v5e
topology: v5e:2x2
jax: 0.10.0
libtpu: 0.0.40
codegen_flags: <defaults>
</compile_context>

<pallas_src>
import math
import functools

import jax
import jax.numpy as jnp
from jax import lax
from jax.experimental import pallas as pl
from jax.experimental.pallas import tpu as pltpu


# ---------------------------------------------------------------------------
# Kernel 1: tiled dense layer  y = x @ w + b   (w stored as (K, N), pre-transposed once)
# ---------------------------------------------------------------------------
def _linear_kernel(x_ref, w_ref, b_ref, o_ref, acc_ref):
    @pl.when(pl.program_id(2) == 0)
    def _():
        acc_ref[...] = jnp.zeros_like(acc_ref)

    acc_ref[...] += jnp.dot(x_ref[...], w_ref[...],
                            preferred_element_type=jnp.float32)

    @pl.when(pl.program_id(2) == pl.num_programs(2) - 1)
    def _():
        o_ref[...] = (acc_ref[...] + b_ref[...].astype(jnp.float32)).astype(o_ref.dtype)


def _round_up(x, m):
    return ((x + m - 1) // m) * m


def _tile_and_pad(dim, target):
    """If dim fits in one tile, use the full dim (always legal as a block dim);
    otherwise use the (8,128)-aligned target and pad the array up to a multiple."""
    if dim <= target:
        return dim, dim
    return target, _round_up(dim, target)


def linear(x, w, b, *, out_dtype=None, tm=256, tn=256, tk=512):
    """x: (M, K), w: (K, N) (already W^T of the nn.Linear weight), b: (N,) f32."""
    M, K = x.shape
    K2, N = w.shape
    assert K == K2
    out_dtype = out_dtype if out_dtype is not None else x.dtype

    tm, Mp = _tile_and_pad(M, tm)
    tn, Np = _tile_and_pad(N, tn)
    tk, Kp = _tile_and_pad(K, tk)

    if (Mp, Kp) != (M, K):
        x = jnp.pad(x, ((0, Mp - M), (0, Kp - K)))
    if (Kp, Np) != (K, N):
        w = jnp.pad(w, ((0, Kp - K), (0, Np - N)))
    b2 = b.reshape(1, N).astype(jnp.float32)
    if Np != N:
        b2 = jnp.pad(b2, ((0, 0), (0, Np - N)))

    out = pl.pallas_call(
        _linear_kernel,
        out_shape=jax.ShapeDtypeStruct((Mp, Np), out_dtype),
        grid=(Mp // tm, Np // tn, Kp // tk),
        in_specs=[
            pl.BlockSpec((tm, tk), lambda i, j, k: (i, k)),
            pl.BlockSpec((tk, tn), lambda i, j, k: (k, j)),
            pl.BlockSpec((1, tn), lambda i, j, k: (0, j)),
        ],
        out_specs=pl.BlockSpec((tm, tn), lambda i, j, k: (i, j)),
        scratch_shapes=[pltpu.VMEM((tm, tn), jnp.float32)],
        compiler_params=pltpu.CompilerParams(
            dimension_semantics=("parallel", "parallel", "arbitrary")),
    )(x, w, b2)

    if (Mp, Np) != (M, N):
        out = out[:M, :N]
    return out


# ---------------------------------------------------------------------------
# Kernel 2: scaled-dot-product attention, all heads of one batch per grid step.
# Inputs/outputs stay in the lane-dense (B, S, h*d_k) projection layout; optionally
# a single fused (B, S, 3*h*d_k) QKV tensor is consumed directly.
# ---------------------------------------------------------------------------
def _attention_kernel(*refs, h, d_k, d_model, scale, has_mask, return_attn, fused_qkv):
    idx = 0
    if fused_qkv:
        qkv_ref = refs[idx]
        idx += 1
    else:
        q_ref, k_ref, v_ref = refs[idx], refs[idx + 1], refs[idx + 2]
        idx += 3
    mask_ref = None
    if has_mask:
        mask_ref = refs[idx]
        idx += 1
    o_ref = refs[idx]
    idx += 1
    p_ref = refs[idx] if return_attn else None

    # Hoist the mask decode out of the head loop (broadcast over heads).
    msk = (mask_ref[0] != 0) if has_mask else None        # (S, S) bool

    # Static loop over heads: each head is a static lane slice of the VMEM block.
    for head in range(h):
        lo = head * d_k
        if fused_qkv:
            qh = qkv_ref[0, :, lo:lo + d_k]                       # (S, d_k)
            kh = qkv_ref[0, :, d_model + lo:d_model + lo + d_k]
            vh = qkv_ref[0, :, 2 * d_model + lo:2 * d_model + lo + d_k]
        else:
            qh = q_ref[0, :, lo:lo + d_k]
            kh = k_ref[0, :, lo:lo + d_k]
            vh = v_ref[0, :, lo:lo + d_k]

        # Fold 1/sqrt(d_k) into q (S*d_k elements) instead of scaling S*S scores.
        qh = qh * scale

        # scores = qh @ kh^T via contraction dims -> no XLU transpose of kh.
        scores = lax.dot_general(
            qh, kh, (((1,), (1,)), ((), ())),
            preferred_element_type=jnp.float32)                   # (S, S) f32

        if has_mask:
            scores = jnp.where(msk, -1e9, scores)                 # masked_fill(mask, -1e9)

        # Numerically stable softmax; denominator reciprocal on the EUP.
        m = jnp.max(scores, axis=-1, keepdims=True)
        e = jnp.exp(scores - m)
        denom = jnp.sum(e, axis=-1, keepdims=True)
        p = e * pl.reciprocal(denom, approx=True)                 # (S, S) f32

        ctx = jnp.dot(p.astype(vh.dtype), vh,
                      preferred_element_type=jnp.float32)         # (S, d_k) f32

        o_ref[0, :, lo:lo + d_k] = ctx.astype(o_ref.dtype)
        if return_attn:
            p_ref[0, head] = p


def _attention_call(tensors, *, B, S, d_model, h, mask, return_attn, fused_qkv, out_dtype):
    d_k = d_model // h
    scale = 1.0 / math.sqrt(d_k)
    has_mask = mask is not None

    args = list(tensors)
    in_specs = [pl.BlockSpec((1, S, t.shape[-1]), lambda b: (b, 0, 0)) for t in tensors]

    if has_mask:
        m = jnp.asarray(mask)
        if m.ndim == 2:
            m = m[None]                                   # (1, S, S)
        m = m.astype(jnp.int32)
        args.append(m)
        if m.shape[0] == 1:
            # Pin block index 0: the mask block stays resident, no per-batch re-DMA.
            in_specs.append(pl.BlockSpec((1, S, S), lambda b: (0, 0, 0)))
        else:
            in_specs.append(pl.BlockSpec((1, S, S), lambda b: (b, 0, 0)))

    out_shape = [jax.ShapeDtypeStruct((B, S, d_model), out_dtype)]
    out_specs = [pl.BlockSpec((1, S, d_model), lambda b: (b, 0, 0))]
    if return_attn:
        out_shape.append(jax.ShapeDtypeStruct((B, h, S, S), jnp.float32))
        out_specs.append(pl.BlockSpec((1, h, S, S), lambda b: (b, 0, 0, 0)))

    kernel = functools.partial(_attention_kernel, h=h, d_k=d_k, d_model=d_model,
                               scale=scale, has_mask=has_mask,
                               return_attn=return_attn, fused_qkv=fused_qkv)

    outs = pl.pallas_call(
        kernel,
        out_shape=tuple(out_shape),
        grid=(B,),
        in_specs=in_specs,
        out_specs=tuple(out_specs),
        compiler_params=pltpu.CompilerParams(
            dimension_semantics=("parallel",),
            # 32 MiB scoped VMEM: above v5e's 16 MiB default, within every part's physical
            # VMEM; needed once S grows (full-S probs block when return_attn=True).
            vmem_limit_bytes=32 * 1024 * 1024),
    )(*args)

    ctx = outs[0]
    attn_p = outs[1] if return_attn else None
    return ctx, attn_p


def attention(q, k, v, *, h, mask=None, return_attn=True):
    """q, k, v: (B, S, D=h*d_k).  Returns (ctx (B,S,D), attn (B,h,S,S) or None)."""
    B, S, D = q.shape
    assert D % h == 0
    return _attention_call([q, k, v], B=B, S=S, d_model=D, h=h, mask=mask,
                           return_attn=return_attn, fused_qkv=False, out_dtype=q.dtype)


def attention_fused_qkv(qkv, *, h, mask=None, return_attn=True):
    """qkv: (B, S, 3*D) fused projection [q | k | v].  Returns (ctx (B,S,D), attn or None)."""
    B, S, D3 = qkv.shape
    D = D3 // 3
    assert D % h == 0
    return _attention_call([qkv], B=B, S=S, d_model=D, h=h, mask=mask,
                           return_attn=return_attn, fused_qkv=True, out_dtype=qkv.dtype)


# ---------------------------------------------------------------------------
# Parameter preparation: one-time transpose to (in, out) + fused QKV weight.
# ---------------------------------------------------------------------------
def prepare_params(torch_style_params, compute_dtype=jnp.float32):
    """torch_style_params: list of 4 (W, b), W stored PyTorch-style (out, in).
    Pre-transposes W to (in, out) once (no per-forward HBM transpose), optionally casts
    weights to bf16 for the MXU fast path, and builds a fused QKV weight."""
    proj = []
    for W, b in torch_style_params:
        proj.append((jnp.asarray(W.T, dtype=compute_dtype),
                     jnp.asarray(b, dtype=jnp.float32)))
    w_qkv = jnp.concatenate([proj[0][0], proj[1][0], proj[2][0]], axis=1)
    b_qkv = jnp.concatenate([proj[0][1], proj[1][1], proj[2][1]], axis=0)
    return {"proj": proj, "w_qkv": w_qkv, "b_qkv": b_qkv,
            "compute_dtype": compute_dtype}


# ---------------------------------------------------------------------------
# MultiHeadedAttention forward
# ---------------------------------------------------------------------------
def multi_headed_attention(params, query, key, value, h, mask=None, return_attn=True):
    """query/key/value: (B, S, d_model) f32.  Returns (out (B,S,d_model) f32,
    attn (B,h,S,S) f32 or None)."""
    B, S, D = query.shape
    cdt = params["compute_dtype"]

    def flat(x):
        return x.reshape(B * S, D).astype(cdt)

    if (query is key) and (key is value):
        # Self-attention fast path: fused QKV projection (x read from HBM once) and the
        # fused (B,S,3D) activation consumed directly by the attention kernel (no split).
        qkv = linear(flat(query), params["w_qkv"], params["b_qkv"], out_dtype=cdt)
        ctx, attn_p = attention_fused_qkv(qkv.reshape(B, S, 3 * D), h=h, mask=mask,
                                          return_attn=return_attn)
    else:
        (wq, bq), (wk, bk), (wv, bv), _ = params["proj"]
        q = linear(flat(query), wq, bq, out_dtype=cdt).reshape(B, S, D)
        k = linear(flat(key),   wk, bk, out_dtype=cdt).reshape(B, S, D)
        v = linear(flat(value), wv, bv, out_dtype=cdt).reshape(B, S, D)
        ctx, attn_p = attention(q, k, v, h=h, mask=mask, return_attn=return_attn)

    wo, bo = params["proj"][3]
    out = linear(ctx.reshape(B * S, D), wo, bo, out_dtype=jnp.float32).reshape(B, S, D)
    return out, attn_p


# ---------------------------------------------------------------------------
# Pure-JAX reference (mirrors the PyTorch forward) for correctness check
# ---------------------------------------------------------------------------
def reference_mha(torch_params, query, key, value, h, mask=None):
    B, S, d_model = query.shape
    d_k = d_model // h

    def proj(x, W, b):
        y = x @ W.T + b
        return y.reshape(B, S, h, d_k).transpose(0, 2, 1, 3)

    q = proj(query, *torch_params[0])
    k = proj(key, *torch_params[1])
    v = proj(value, *torch_params[2])
    scores = jnp.einsum("bhqd,bhkd->bhqk", q, k) / math.sqrt(d_k)
    if mask is not None:
        scores = jnp.where(mask, -1e9, scores)
    p = jax.nn.softmax(scores, axis=-1)
    ctx = jnp.einsum("bhqk,bhkd->bhqd", p, v)
    x = ctx.transpose(0, 2, 1, 3).reshape(B, S, d_model)
    Wo, bo = torch_params[3]
    return x @ Wo.T + bo, p


if __name__ == "__main__":
    B, S, d_model, h = 2, 8, 32, 4

    key0 = jax.random.PRNGKey(0)
    keys = jax.random.split(key0, 12)

    # Deterministic nn.Linear-style init: U(-1/sqrt(fan_in), 1/sqrt(fan_in)), torch layout.
    bound = 1.0 / math.sqrt(d_model)
    torch_params = []
    for i in range(4):
        W = jax.random.uniform(keys[2 * i], (d_model, d_model),
                               minval=-bound, maxval=bound, dtype=jnp.float32)
        b = jax.random.uniform(keys[2 * i + 1], (d_model,),
                               minval=-bound, maxval=bound, dtype=jnp.float32)
        torch_params.append((W, b))

    query = jax.random.normal(keys[8], (B, S, d_model), dtype=jnp.float32)
    key_in = jax.random.normal(keys[9], (B, S, d_model), dtype=jnp.float32)
    value = jax.random.normal(keys[10], (B, S, d_model), dtype=jnp.float32)

    # References.
    ref_out_cross, ref_attn_cross = reference_mha(torch_params, query, key_in, value, h)
    ref_out_self, ref_attn_self = reference_mha(torch_params, query, query, query, h)
    causal = jnp.triu(jnp.ones((S, S), dtype=bool), k=1)   # True -> masked_fill(-1e9)
    ref_out_mask, ref_attn_mask = reference_mha(torch_params, query, query, query, h,
                                                mask=causal)

    # --- f32 path, distinct q/k/v, full attention-probs output ---------------------------
    params_f32 = prepare_params(torch_params, compute_dtype=jnp.float32)
    out, attn = multi_headed_attention(params_f32, query, key_in, value, h,
                                       return_attn=True)
    out = jax.block_until_ready(out)
    attn = jax.block_until_ready(attn)
    assert out.shape == (B, S, d_model)
    assert attn.shape == (B, h, S, S)
    # Tolerance accounts for the EUP approx reciprocal in the softmax denominator.
    assert jnp.allclose(out, ref_out_cross, atol=3e-3, rtol=3e-3)
    assert jnp.allclose(attn, ref_attn_cross, atol=3e-3, rtol=3e-3)

    # --- f32 path, self-attention: fused QKV projection + fused-QKV attention kernel -----
    out_self, attn_self = multi_headed_attention(params_f32, query, query, query, h,
                                                 return_attn=True)
    out_self = jax.block_until_ready(out_self)
    assert jnp.allclose(out_self, ref_out_self, atol=3e-3, rtol=3e-3)
    assert jnp.allclose(attn_self, ref_attn_self, atol=3e-3, rtol=3e-3)

    # --- same self-attention path with the probs HBM write skipped -----------------------
    out_self2, attn_none = multi_headed_attention(params_f32, query, query, query, h,
                                                  return_attn=False)
    out_self2 = jax.block_until_ready(out_self2)
    assert attn_none is None
    assert jnp.allclose(out_self2, ref_out_self, atol=3e-3, rtol=3e-3)

    # --- f32 path, masked (causal) self-attention ----------------------------------------
    out_m, attn_m = multi_headed_attention(params_f32, query, query, query, h,
                                           mask=causal, return_attn=True)
    out_m = jax.block_until_ready(out_m)
    assert jnp.allclose(out_m, ref_out_mask, atol=3e-3, rtol=3e-3)
    assert jnp.allclose(attn_m, ref_attn_mask, atol=3e-3, rtol=3e-3)

    # --- bf16 MXU path (f32 accumulation, f32 softmax), looser tolerance -----------------
    params_bf16 = prepare_params(torch_params, compute_dtype=jnp.bfloat16)
    out_bf, attn_bf = multi_headed_attention(params_bf16, query, key_in, value, h,
                                             return_attn=True)
    out_bf = jax.block_until_ready(out_bf)
    assert jnp.allclose(out_bf.astype(jnp.float32), ref_out_cross, atol=5e-2, rtol=5e-2)
    assert jnp.allclose(attn_bf, ref_attn_cross, atol=5e-2, rtol=5e-2)

    print("KERNEL_OK")
</pallas_src>

<mosaic_0001>
module attributes {stable_mosaic.version = 11 : i64} {
  func.func @_linear_kernel(%arg0: i32, %arg1: i32, %arg2: i32, %arg3: memref<16x32xf32, #tpu.memory_space<vmem>>, %arg4: memref<32x32xf32, #tpu.memory_space<vmem>>, %arg5: memref<1x32xf32, #tpu.memory_space<vmem>>, %arg6: memref<16x32xf32, #tpu.memory_space<vmem>>, %arg7: memref<16x32xf32, #tpu.memory_space<vmem>>) attributes {dimension_semantics = [#tpu.dimension_semantics<parallel>, #tpu.dimension_semantics<parallel>, #tpu.dimension_semantics<arbitrary>], iteration_bounds = array<i64: 1, 1, 1>, scalar_prefetch = 0 : i64, scratch_operands = 1 : i64, tpu.core_type = #tpu.core_type<tc>, window_params = [{transform_indices = @transform_0, window_bounds = array<i64: 16, 32>}, {transform_indices = @transform_1, window_bounds = array<i64: 32, 32>}, {transform_indices = @transform_2, window_bounds = array<i64: 1, 32>}, {transform_indices = @transform_3, window_bounds = array<i64: 16, 32>}]} {
    %c0_i32 = arith.constant 0 : i32
    %0 = arith.cmpi eq, %arg2, %c0_i32 : i32
    %1 = arith.extui %0 : i1 to i32
    %c0_i32_0 = arith.constant 0 : i32
    %2 = arith.cmpi ne, %1, %c0_i32_0 : i32
    scf.if %2 {
      %cst_10 = arith.constant 0.000000e+00 : f32
      %12 = vector.broadcast %cst_10 : f32 to vector<16x32xf32>
      %c0_11 = arith.constant 0 : index
      %c0_12 = arith.constant 0 : index
      %13 = vector.load %arg7[%c0_11, %c0_12] : memref<16x32xf32, #tpu.memory_space<vmem>>, vector<16x32xf32>
      tpu.vector_store %arg7[%c0_11, %c0_12], %12 {strides = array<i32>} : memref<16x32xf32, #tpu.memory_space<vmem>>, vector<16x32xf32>,
    } else {
    }
    %c0 = arith.constant 0 : index
    %c0_1 = arith.constant 0 : index
    %3 = vector.load %arg7[%c0, %c0_1] : memref<16x32xf32, #tpu.memory_space<vmem>>, vector<16x32xf32>
    %c0_2 = arith.constant 0 : index
    %c0_3 = arith.constant 0 : index
    %4 = vector.load %arg3[%c0_2, %c0_3] : memref<16x32xf32, #tpu.memory_space<vmem>>, vector<16x32xf32>
    %c0_4 = arith.constant 0 : index
    %c0_5 = arith.constant 0 : index
    %5 = vector.load %arg4[%c0_4, %c0_5] : memref<32x32xf32, #tpu.memory_space<vmem>>, vector<32x32xf32>
    %cst = arith.constant dense<0.000000e+00> : vector<16x32xf32>
    %6 = tpu.matmul %4, %5, %cst {dimension_numbers = #tpu.dot_dimension_numbers<[1], [0], [0], [1], [0, 0, 1, 1], [], []>} : vector<16x32xf32>, vector<32x32xf32>, vector<16x32xf32> -> vector<16x32xf32>
    %7 = arith.addf %3, %6 : vector<16x32xf32>
    %c0_6 = arith.constant 0 : index
    %c0_7 = arith.constant 0 : index
    %8 = vector.load %arg7[%c0_6, %c0_7] : memref<16x32xf32, #tpu.memory_space<vmem>>, vector<16x32xf32>
    tpu.vector_store %arg7[%c0_6, %c0_7], %7 {strides = array<i32>} : memref<16x32xf32, #tpu.memory_space<vmem>>, vector<16x32xf32>,
    %c0_i32_8 = arith.constant 0 : i32
    %9 = arith.cmpi eq, %arg2, %c0_i32_8 : i32
    %10 = arith.extui %9 : i1 to i32
    %c0_i32_9 = arith.constant 0 : i32
    %11 = arith.cmpi ne, %10, %c0_i32_9 : i32
    scf.if %11 {
      %c0_10 = arith.constant 0 : index
      %c0_11 = arith.constant 0 : index
      %12 = vector.load %arg7[%c0_10, %c0_11] : memref<16x32xf32, #tpu.memory_space<vmem>>, vector<16x32xf32>
      %c0_12 = arith.constant 0 : index
      %c0_13 = arith.constant 0 : index
      %13 = vector.load %arg5[%c0_12, %c0_13] : memref<1x32xf32, #tpu.memory_space<vmem>>, vector<1x32xf32>
      %14 = vector.broadcast %13 : vector<1x32xf32> to vector<16x32xf32>
      %15 = arith.addf %12, %14 : vector<16x32xf32>
      %c0_14 = arith.constant 0 : index
      %c0_15 = arith.constant 0 : index
      %16 = vector.load %arg6[%c0_14, %c0_15] : memref<16x32xf32, #tpu.memory_space<vmem>>, vector<16x32xf32>
      tpu.vector_store %arg6[%c0_14, %c0_15], %15 {strides = array<i32>} : memref<16x32xf32, #tpu.memory_space<vmem>>, vector<16x32xf32>,
    } else {
    }
    return
  }
  func.func @transform_0(%arg0: i32, %arg1: i32, %arg2: i32) -> (i32, i32) {
    %c0_i32 = arith.constant 0 : i32
    return %arg0, %arg2 : i32, i32
  }
  func.func @transform_1(%arg0: i32, %arg1: i32, %arg2: i32) -> (i32, i32) {
    %c0_i32 = arith.constant 0 : i32
    return %arg2, %arg1 : i32, i32
  }
  func.func @transform_2(%arg0: i32, %arg1: i32, %arg2: i32) -> (i32, i32) {
    %c0_i32 = arith.constant 0 : i32
    %c0_i32_0 = arith.constant 0 : i32
    return %c0_i32, %arg1 : i32, i32
  }
  func.func @transform_3(%arg0: i32, %arg1: i32, %arg2: i32) -> (i32, i32) {
    %c0_i32 = arith.constant 0 : i32
    return %arg0, %arg1 : i32, i32
  }
}

</mosaic_0001>

<llo_original>
// kernel: tpu_custom_call.1
$region0: #{tpu_custom_call.1}
  #allocation0 [shape = 'u32[]', space=smem, size = 0x4, offset = 0x4, fixed_abs, tag = 'smem constant byte address 0x4 - core index']
  #allocation1 [shape = 'u32[72,128]{1,0:T(1,128)}', space=vmem, size = 0x9000, scoped, tag = 'internal scratch']
  #allocation2 [shape = 'f32[16,32]{1,0:T(8,128)}', space=vmem, size = 0x2000, scoped, tag = 'scratch operand']
  %s0 = inlined_call_operand.hbm [shape: f32[16,32], index: 0, kind: input, shape index: {}]
  %s1 = inlined_call_operand.hbm [shape: f32[32,32], index: 1, kind: input, shape index: {}]
  %s2 = inlined_call_operand.vmem [shape: f32[1,32], index: 2, kind: input, shape index: {}]
  %s3 = inlined_call_operand.hbm [shape: f32[16,32], index: 3, kind: output, shape index: {}]
  %s4 = sld [smem:[#allocation0]]
  $region38: #{tpu_custom_call.1} parent=0
    _
  %s6 = ssub.s32 1, %s4
  %s7 = scalar_select 0, %s6, %s4
  $region1: #{tpu_custom_call.1} parent=0
    #allocation3 [shape = 'u8[8192]{0}', space=vmem, size = 0x2000, scoped, tag = 'input window, operand 0, single buffered']
    #allocation4 [shape = 's32[1]{0}', space=sflag, size = 0x4, scoped, tag = 'scoped memory for tpu_custom_call.1']
    #allocation5 [shape = 's32[1]{0}', space=sflag, size = 0x4, scoped, tag = 'scoped memory for tpu_custom_call.1']
    #allocation6 [shape = 'u8[16384]{0}', space=vmem, size = 0x4000, scoped, tag = 'input window, operand 1, single buffered']
    #allocation7 [shape = 's32[1]{0}', space=sflag, size = 0x4, scoped, tag = 'scoped memory for tpu_custom_call.1']
    #allocation8 [shape = 'u8[8192]{0}', space=vmem, size = 0x2000, scoped, tag = 'output window, operand 0, single buffered']
    %8 = vsyncpa [#allocation4], 0
    %9 = vsyncpa [#allocation7], 0
    %10 = vsyncpa [#allocation5], 0
    // Predicated region
    $region2: #{tpu_custom_call.1} parent=1 // pred_check
      _
    $region3: #{tpu_custom_call.1} parent=1 // pred_check_branch
      %12 = sbr.rel (0) target = $region5
    $region4: #{tpu_custom_call.1} parent=1 // pred_region
      %14 = vsyncadd [#allocation4], 0
      %s15 = sshll.u32 %s0, 4
      %s16 = int_to_ptr.hbm [resolvable:$true] %s15
      %s17 = sshll.u32 [#allocation3], 4
      %s18 = int_to_ptr.vmem [resolvable:$true] %s17
      %23 = dma.hbm_to_vmem [thread:$0]  %s16, 256, %s18, [#allocation4], 128, 128, 8
    $region5: #{tpu_custom_call.1} parent=1 // pred_fallthru
      _
    // Predicated region
    $region6: #{tpu_custom_call.1} parent=1 // pred_check
      _
    $region7: #{tpu_custom_call.1} parent=1 // pred_check_branch
      %25 = sbr.rel (0) target = $region9
    $region8: #{tpu_custom_call.1} parent=1 // pred_region
      %27 = vsyncadd [#allocation7], 0
      %s28 = sshll.u32 %s1, 4
      %s29 = int_to_ptr.hbm [resolvable:$true] %s28
      %s30 = sshll.u32 [#allocation6], 4
      %s31 = int_to_ptr.vmem [resolvable:$true] %s30
      %36 = dma.hbm_to_vmem [thread:$0]  %s29, 512, %s31, [#allocation7], 128, 128, 8
    $region9: #{tpu_custom_call.1} parent=1 // pred_fallthru
      _
    // Predicated region
    $region10: #{tpu_custom_call.1} parent=1 // pred_check
      _
    $region11: #{tpu_custom_call.1} parent=1 // pred_check_branch
      %38 = sbr.rel (0) target = $region13
    $region12: #{tpu_custom_call.1} parent=1 // pred_region
      _
    $region13: #{tpu_custom_call.1} parent=1 // pred_fallthru
      _
    // Predicated region
    $region14: #{tpu_custom_call.1} parent=1 // pred_check
      _
    $region15: #{tpu_custom_call.1} parent=1 // pred_check_branch
      %40 = sbr.rel (0) target = $region17
    $region16: #{tpu_custom_call.1} parent=1 // pred_region
      %42 = dma.done [#allocation4], 256
    $region17: #{tpu_custom_call.1} parent=1 // pred_fallthru
      _
    // Predicated region
    $region18: #{tpu_custom_call.1} parent=1 // pred_check
      _
    $region19: #{tpu_custom_call.1} parent=1 // pred_check_branch
      %44 = sbr.rel (0) target = $region21
    $region20: #{tpu_custom_call.1} parent=1 // pred_region
      %46 = dma.done [#allocation7], 512
    $region21: #{tpu_custom_call.1} parent=1 // pred_fallthru
      _
    %p47 = scmp.eq.s32.totalorder 0, 0
    // Predicated region
    $region22: #{tpu_custom_call.1} parent=1 // pred_check
      %p48 = pneg %p47
    $region23: #{tpu_custom_call.1} parent=1 // pred_check_branch
      %50 = sbr.rel (%p48) target = $region25
    $region24: #{tpu_custom_call.1} parent=1 // pred_region
      %vm51 = vcmask 261120
      %52 = vst.msk [vmem:[#allocation2] sm:$0xff] %vm51, 0.0
      %53 = vst.msk [vmem:[#allocation2 + $0x8] sm:$0xff] %vm51, 0.0
    $region25: #{tpu_custom_call.1} parent=1 // pred_fallthru
      _
    %v54 = vld [vmem:[#allocation2] sm:$0xff]
    %v55 = vld [vmem:[#allocation2 + $0x8] sm:$0xff]
    %v56 = vld [vmem:[#allocation3] sm:$0xff]
    %v57 = vld [vmem:[#allocation3 + $0x8] sm:$0xff]
    %v58 = vld [vmem:[#allocation6] sm:$0xff]
    %v59 = vld [vmem:[#allocation6 + $0x8] sm:$0xff]
    %v60 = vld [vmem:[#allocation6 + $0x10] sm:$0xff]
    %v61 = vld [vmem:[#allocation6 + $0x18] sm:$0xff]
    %vm62 = vcmask 261120
    %v64 = vsel %vm62, %v56, 0
    %v67 = vsel %vm62, %v57, 0
    %69 = vmatpush.msra.mxu0 0.0
    %70 = vmatpush.msra.mxu0 0.0
    %71 = vmatpush.msra.mxu0 0.0
    %72 = vmatpush.msra.mxu0 0.0
    %73 = vmatpush.msra.mxu0 0.0
    %74 = vmatpush.msra.mxu0 0.0
    %75 = vmatpush.msra.mxu0 0.0
    %76 = vmatpush.msra.mxu0 0.0
    %77 = vmatpush.msra.mxu0 0.0
    %78 = vmatpush.msra.mxu0 0.0
    %79 = vmatpush.msra.mxu0 0.0
    %80 = vmatpush.msra.mxu0 0.0
    %81 = vmatpush.msra.mxu0 %v61
    %82 = vmatpush.msra.mxu0 %v60
    %83 = vmatpush.msra.mxu0 %v59
    %84 = vmatpush.msra.mxu0 %v58
    %85 = vmatmul.f32.gmra.mxu0 %v64
    %v86 = vpop.f32.mrf.mxu0
    %v87 = vadd.f32 0.0, %v86
    %88 = vmatmul.f32.gmra.mxu0 %v67
    %v89 = vpop.f32.mrf.mxu0
    %v90 = vadd.f32 0.0, %v89
    %91 = vdwg.mxu0
    %v92 = vadd.f32 %v54, %v87
    %v93 = vadd.f32 %v55, %v90
    %94 = vst.msk [vmem:[#allocation2] sm:$0xff] %vm62, %v92
    %95 = vst.msk [vmem:[#allocation2 + $0x8] sm:$0xff] %vm62, %v93
    // Predicated region
    $region26: #{tpu_custom_call.1} parent=1 // pred_check
      %p96 = pneg %p47
    $region27: #{tpu_custom_call.1} parent=1 // pred_check_branch
      %98 = sbr.rel (%p96) target = $region29
    $region28: #{tpu_custom_call.1} parent=1 // pred_region
      %v99 = vld [vmem:[#allocation2] sm:$0xff]
      %v100 = vld [vmem:[#allocation2 + $0x8] sm:$0xff]
      %v101 = vld [vmem:[%s2] sm:$0x1]
      %v103 = vperm.slane %v101, 0
      %v105 = vadd.f32 %v99, %v103
      %v106 = vadd.f32 %v100, %v103
      %107 = vst.msk [vmem:[#allocation8] sm:$0xff] %vm62, %v105
      %108 = vst.msk [vmem:[#allocation8 + $0x8] sm:$0xff] %vm62, %v106
    $region29: #{tpu_custom_call.1} parent=1 // pred_fallthru
      _
    // Predicated region
    $region30: #{tpu_custom_call.1} parent=1 // pred_check
      _
    $region31: #{tpu_custom_call.1} parent=1 // pred_check_branch
      %110 = sbr.rel (0) target = $region33
    $region32: #{tpu_custom_call.1} parent=1 // pred_region
      %112 = vsyncadd [#allocation5], 0
      %s113 = sshll.u32 [#allocation8], 4
      %s114 = int_to_ptr.vmem [resolvable:$true] %s113
      %s115 = sshll.u32 %s3, 4
      %s116 = int_to_ptr.hbm [resolvable:$true] %s115
      %121 = dma.vmem_to_hbm [thread:$0]  %s114, 256, %s116, [#allocation5], 128, 128, 8
    $region33: #{tpu_custom_call.1} parent=1 // pred_fallthru
      _
    // Predicated region
    $region34: #{tpu_custom_call.1} parent=1 // pred_check
      _
    $region35: #{tpu_custom_call.1} parent=1 // pred_check_branch
      %123 = sbr.rel (0) target = $region37
    $region36: #{tpu_custom_call.1} parent=1 // pred_region
      %125 = dma.done [#allocation5], 256
    $region37: #{tpu_custom_call.1} parent=1 // pred_fallthru
      _
    %126 = vsyncpa [#allocation4], 1
    %127 = vsyncpa [#allocation7], 1
    %128 = vsyncpa [#allocation5], 1

</llo_original>
